<compile_context>
chip_gen: v6e
topology: v6e:2x2x1
jax: 0.10.0
libtpu: 0.0.40
codegen_flags: <defaults>
</compile_context>

<pallas_src>
import jax
import jax.numpy as jnp
from jax.experimental import pallas as pl
from jax.experimental.pallas import tpu as pltpu

INT8_MAX = 127
INT8_MIN = -128

# ~4 MiB per block buffer => with double-buffered in + out (4 buffers) we stay
# well under every chip's scoped-VMEM default.
_TARGET_BLOCK_BYTES = 4 * 1024 * 1024
_MAX_TILE_ROWS = 2048


def _fake_quant_kernel(params_ref, x_ref, o_ref):
    # params_ref (SMEM, f32[3]) = [scale, INT8_MIN - zp, INT8_MAX - zp]
    scale = params_ref[0]
    lo = params_ref[1]
    hi = params_ref[2]
    q = jnp.clip(jnp.round(x_ref[...] / scale), lo, hi)
    o_ref[...] = q * scale


def fake_quantize_per_tensor_affine(x, scale, zero_point):
    """x: float32 tensor (rank >= 1); scale: (1,) f32; zero_point: (1,) i32."""
    orig_shape = x.shape
    n = orig_shape[-1]
    r = 1
    for d in orig_shape[:-1]:
        r *= d
    x2 = x.reshape(r, n)

    # Hoist all scalar math out of the kernel's vector path: fold zero_point
    # into the clip bounds (exactly equivalent to add-zp / clip / sub-zp).
    zp_f = zero_point.astype(jnp.float32)[0]
    params = jnp.stack(
        [scale[0],
         jnp.float32(INT8_MIN) - zp_f,
         jnp.float32(INT8_MAX) - zp_f])

    # Row-tile sizing: big lane-dense blocks, multiple of 8 rows, capped so one
    # block buffer is ~4 MiB.  Small inputs collapse to a single full block.
    bytes_per_row = n * 4
    tile_r = max(8, min(_MAX_TILE_ROWS,
                        (_TARGET_BLOCK_BYTES // bytes_per_row) // 8 * 8))
    if r <= tile_r:
        tile_r = r  # single block == full array dims (no (8,128) constraint)
    grid = (pl.cdiv(r, tile_r),)

    out2 = pl.pallas_call(
        _fake_quant_kernel,
        out_shape=jax.ShapeDtypeStruct((r, n), x.dtype),
        grid_spec=pltpu.PrefetchScalarGridSpec(
            num_scalar_prefetch=0,
            grid=grid,
            in_specs=[
                pl.BlockSpec(memory_space=pltpu.MemorySpace.SMEM),    # params
                pl.BlockSpec((tile_r, n), lambda i: (i, 0)),          # x rows
            ],
            out_specs=pl.BlockSpec((tile_r, n), lambda i: (i, 0)),
        ),
        compiler_params=pltpu.CompilerParams(
            dimension_semantics=("parallel",)),
        cost_estimate=pl.CostEstimate(
            flops=3 * r * n,
            transcendentals=0,
            bytes_accessed=2 * r * n * 4 + 12),
    )(params, x2)

    return out2.reshape(orig_shape)


if __name__ == "__main__":
    key = jax.random.PRNGKey(0)
    k_in, k_sc, k_zp = jax.random.split(key, 3)

    # Deterministic "parameters", mirroring the torch __init__ recipe:
    #   scales      = (randn(1) - 0.5) * 0.05
    #   zero_points = ((randn(1) - 0.5) * 32).to(int32)
    scales = (jax.random.normal(k_sc, (1,), dtype=jnp.float32) - 0.5) * 0.05
    zero_points = ((jax.random.normal(k_zp, (1,), dtype=jnp.float32) - 0.5)
                   * 32.0).astype(jnp.int32)

    # Rank-3 float32 input (model name: QuantizeLinear_F32_R3).
    x = jax.random.normal(k_in, (2, 8, 128), dtype=jnp.float32)

    out = fake_quantize_per_tensor_affine(x, scales, zero_points)
    out = jax.block_until_ready(out)

    # Reference check in plain JAX (torch semantics, unfolded form).
    s = scales[0]
    zp = zero_points[0].astype(jnp.float32)
    ref = (jnp.clip(jnp.round(x / s) + zp, INT8_MIN, INT8_MAX) - zp) * s
    assert jnp.allclose(out, ref, atol=1e-6, rtol=1e-6), "mismatch vs reference"

    print("KERNEL_OK")
</pallas_src>

<mosaic_0001>
module attributes {stable_mosaic.version = 11 : i64} {
  func.func @_fake_quant_kernel(%arg0: i32, %arg1: memref<3xf32, #tpu.memory_space<smem>>, %arg2: memref<16x128xf32, #tpu.memory_space<vmem>>, %arg3: memref<16x128xf32, #tpu.memory_space<vmem>>) attributes {dimension_semantics = [#tpu.dimension_semantics<parallel>], iteration_bounds = array<i64: 1>, scalar_prefetch = 0 : i64, scratch_operands = 0 : i64, tpu.core_type = #tpu.core_type<tc>, window_params = [{transform_indices = @transform_0, window_bounds = array<i64: 3>}, {transform_indices = @transform_1, window_bounds = array<i64: 16, 128>}, {transform_indices = @transform_2, window_bounds = array<i64: 16, 128>}]} {
    %c0 = arith.constant 0 : index
    %0 = memref.load %arg1[%c0] : memref<3xf32, #tpu.memory_space<smem>>
    %c1 = arith.constant 1 : index
    %1 = memref.load %arg1[%c1] : memref<3xf32, #tpu.memory_space<smem>>
    %c2 = arith.constant 2 : index
    %2 = memref.load %arg1[%c2] : memref<3xf32, #tpu.memory_space<smem>>
    %c0_0 = arith.constant 0 : index
    %c0_1 = arith.constant 0 : index
    %3 = vector.load %arg2[%c0_0, %c0_1] : memref<16x128xf32, #tpu.memory_space<vmem>>, vector<16x128xf32>
    %4 = vector.broadcast %0 : f32 to vector<16x128xf32>
    %5 = arith.divf %3, %4 : vector<16x128xf32>
    %6 = math.roundeven %5 : vector<16x128xf32>
    %7 = vector.broadcast %1 : f32 to vector<16x128xf32>
    %8 = arith.maximumf %7, %6 : vector<16x128xf32>
    %9 = vector.broadcast %2 : f32 to vector<16x128xf32>
    %10 = arith.minimumf %9, %8 : vector<16x128xf32>
    %11 = vector.broadcast %0 : f32 to vector<16x128xf32>
    %12 = arith.mulf %10, %11 : vector<16x128xf32>
    %c0_2 = arith.constant 0 : index
    %c0_3 = arith.constant 0 : index
    %13 = vector.load %arg3[%c0_2, %c0_3] : memref<16x128xf32, #tpu.memory_space<vmem>>, vector<16x128xf32>
    tpu.vector_store %arg3[%c0_2, %c0_3], %12 {strides = array<i32>} : memref<16x128xf32, #tpu.memory_space<vmem>>, vector<16x128xf32>,
    return
  }
  func.func @transform_0(%arg0: i32) -> i32 {
    %c0_i32 = arith.constant 0 : i32
    %c0_i32_0 = arith.constant 0 : i32
    return %c0_i32 : i32
  }
  func.func @transform_1(%arg0: i32) -> (i32, i32) {
    %c0_i32 = arith.constant 0 : i32
    %c0_i32_0 = arith.constant 0 : i32
    return %arg0, %c0_i32 : i32, i32
  }
  func.func @transform_2(%arg0: i32) -> (i32, i32) {
    %c0_i32 = arith.constant 0 : i32
    %c0_i32_0 = arith.constant 0 : i32
    return %arg0, %c0_i32 : i32, i32
  }
}

</mosaic_0001>

<llo_original>
// kernel: tpu_custom_call.1
$region0: #{tpu_custom_call.1}
  #allocation0 [shape = 'u32[]', space=smem, size = 0x4, offset = 0x4, fixed_abs, tag = 'smem constant byte address 0x4 - core index']
  #allocation1 [shape = 'u32[144,128]{1,0:T(1,128)}', space=vmem, size = 0x12000, scoped, tag = 'internal scratch']
  %s0 = inlined_call_operand.hbm [shape: f32[3], index: 0, kind: input, shape index: {}]
  %s1 = inlined_call_operand.hbm [shape: f32[16,128], index: 1, kind: input, shape index: {}]
  %s2 = inlined_call_operand.hbm [shape: f32[16,128], index: 2, kind: output, shape index: {}]
  %s3 = sld [smem:[#allocation0]]
  $region26: #{tpu_custom_call.1} parent=0
    _
  %s5 = ssub.s32 1, %s3
  %s6 = scalar_select 0, %s5, %s3
  $region1: #{tpu_custom_call.1} parent=0
    #allocation2 [shape = 'u8[512]{0}', space=smem, size = 0x200, scoped, tag = 'input window, operand 0, single buffered']
    #allocation3 [shape = 's32[1]{0}', space=sflag, size = 0x4, scoped, tag = 'scoped memory for tpu_custom_call.1']
    #allocation4 [shape = 's32[1]{0}', space=sflag, size = 0x4, scoped, tag = 'scoped memory for tpu_custom_call.1']
    #allocation5 [shape = 's32[1]{0}', space=sflag, size = 0x4, scoped, tag = 'scoped memory for tpu_custom_call.1']
    #allocation6 [shape = 'u8[8192]{0}', space=vmem, size = 0x2000, scoped, tag = 'input window, operand 1, single buffered']
    #allocation7 [shape = 'u8[8192]{0}', space=vmem, size = 0x2000, scoped, tag = 'output window, operand 0, single buffered']
    %7 = vsyncpa [#allocation5], 0
    %8 = vsyncpa [#allocation3], 0
    %9 = vsyncpa [#allocation4], 0
    // Predicated region
    $region2: #{tpu_custom_call.1} parent=1 // pred_check
      _
    $region3: #{tpu_custom_call.1} parent=1 // pred_check_branch
      %11 = sbr.rel (0) target = $region5
    $region4: #{tpu_custom_call.1} parent=1 // pred_region
      %s13 = ssub.s32 16, 16
      %14 = vsyncadd [#allocation5], %s13
      %17 = dma.hbm_to_smem %s0, 16, [#allocation2], [#allocation5]
    $region5: #{tpu_custom_call.1} parent=1 // pred_fallthru
      _
    // Predicated region
    $region6: #{tpu_custom_call.1} parent=1 // pred_check
      _
    $region7: #{tpu_custom_call.1} parent=1 // pred_check_branch
      %19 = sbr.rel (0) target = $region9
    $region8: #{tpu_custom_call.1} parent=1 // pred_region
      %s21 = ssub.s32 256, 256
      %22 = vsyncadd [#allocation3], %s21
      %s23 = sshll.u32 [#allocation6], 4
      %s24 = int_to_ptr.vmem [resolvable:$true] %s23
      %29 = dma.hbm_to_vmem [thread:$0]  %s1, 256, %s24, [#allocation3], 128, 128, 8
    $region9: #{tpu_custom_call.1} parent=1 // pred_fallthru
      _
    // Predicated region
    $region10: #{tpu_custom_call.1} parent=1 // pred_check
      _
    $region11: #{tpu_custom_call.1} parent=1 // pred_check_branch
      %31 = sbr.rel (0) target = $region13
    $region12: #{tpu_custom_call.1} parent=1 // pred_region
      %32 = dma.done [#allocation5], 16
    $region13: #{tpu_custom_call.1} parent=1 // pred_fallthru
      _
    // Predicated region
    $region14: #{tpu_custom_call.1} parent=1 // pred_check
      _
    $region15: #{tpu_custom_call.1} parent=1 // pred_check_branch
      %34 = sbr.rel (0) target = $region17
    $region16: #{tpu_custom_call.1} parent=1 // pred_region
      %35 = dma.done [#allocation3], 256
    $region17: #{tpu_custom_call.1} parent=1 // pred_fallthru
      _
    %36 = sfence
    %s37 = sld [smem:[#allocation2]]
    %s38 = sld [smem:[#allocation2 + $0x1]]
    %s39 = sld [smem:[#allocation2 + $0x2]]
    %v40 = vld [vmem:[#allocation6] sm:$0xff]
    %v41 = vld [vmem:[#allocation6 + $0x8] sm:$0xff]
    %v42 = vstv %s37
    %v43 = vrcp.pop %v42
    %v44 = vmul.f32 %v40, %v43
    %v45 = vmul.f32 %v41, %v43
    %v46 = vround.ne.pseudo %v44
    %v47 = vround.ne.pseudo %v45
    %v48 = vstv %s38
    %v49 = vmax.f32 %v48, %v46
    %v50 = vmax.f32 %v48, %v47
    %v51 = vstv %s39
    %v52 = vmin.f32 %v51, %v49
    %v53 = vmin.f32 %v51, %v50
    %v54 = vmul.f32 %v52, %v42
    %v55 = vmul.f32 %v53, %v42
    %56 = vst [vmem:[#allocation7] sm:$0xff] %v54
    %57 = vst [vmem:[#allocation7 + $0x8] sm:$0xff] %v55
    // Predicated region
    $region18: #{tpu_custom_call.1} parent=1 // pred_check
      _
    $region19: #{tpu_custom_call.1} parent=1 // pred_check_branch
      %59 = sbr.rel (0) target = $region21
    $region20: #{tpu_custom_call.1} parent=1 // pred_region
      %s61 = ssub.s32 256, 256
      %62 = vsyncadd [#allocation4], %s61
      %s63 = sshll.u32 [#allocation7], 4
      %s64 = int_to_ptr.vmem [resolvable:$true] %s63
      %69 = dma.vmem_to_hbm [thread:$0]  %s64, 256, %s2, [#allocation4], 128, 128, 8
    $region21: #{tpu_custom_call.1} parent=1 // pred_fallthru
      _
    // Predicated region
    $region22: #{tpu_custom_call.1} parent=1 // pred_check
      _
    $region23: #{tpu_custom_call.1} parent=1 // pred_check_branch
      %71 = sbr.rel (0) target = $region25
    $region24: #{tpu_custom_call.1} parent=1 // pred_region
      %72 = dma.done [#allocation4], 256
    $region25: #{tpu_custom_call.1} parent=1 // pred_fallthru
      _
    %73 = vsyncpa [#allocation3], 1
    %74 = vsyncpa [#allocation4], 1
    %75 = vsyncpa [#allocation5], 1

</llo_original>
